<compile_context>
chip_gen: v6e
topology: v6e:2x2x1
jax: 0.10.0
libtpu: 0.0.40
codegen_flags: <defaults>
</compile_context>

<pallas_src>
import functools

import jax
import jax.numpy as jnp
from jax.experimental import pallas as pl
from jax.experimental.pallas import tpu as pltpu


def _round_up(n, m):
    return (n + m - 1) // m * m


def _ffn_kernel(x_ref, g_ref, be_ref, w1_ref, b1_ref, w2_ref, b2_ref, o_ref,
                xn_sc, acc_sc):
    """Grid = (row tiles, d_ff tiles).  Accumulates y += relu(xn @ W1_f + b1_f) @ W2_f."""
    f = pl.program_id(1)

    @pl.when(f == 0)
    def _():
        # LayerNorm in f32, computed once per row tile and cached across f tiles.
        x = x_ref[...].astype(jnp.float32)
        mean = jnp.mean(x, axis=-1, keepdims=True)
        var = jnp.mean(jnp.square(x - mean), axis=-1, keepdims=True)
        xn = (x - mean) * jax.lax.rsqrt(var + 1e-6)
        xn_sc[...] = xn * g_ref[...] + be_ref[...]
        acc_sc[...] = jnp.zeros_like(acc_sc)

    # First linear + ReLU on this d_ff slice.  The weights stay in their native
    # dtype (bf16 runs at full MXU rate); only the small row tile is cast.
    xn = xn_sc[...]
    h = jnp.dot(xn.astype(w1_ref.dtype), w1_ref[...],
                preferred_element_type=jnp.float32) + b1_ref[...]
    h = jnp.maximum(h, 0.0)

    # Second linear: accumulate this slice's contribution in f32.
    acc_sc[...] += jnp.dot(h.astype(w2_ref.dtype), w2_ref[...],
                           preferred_element_type=jnp.float32)

    @pl.when(f == pl.num_programs(1) - 1)
    def _():
        o_ref[...] = (acc_sc[...] + b2_ref[...]
                      + x_ref[...].astype(jnp.float32)).astype(o_ref.dtype)


@functools.partial(jax.jit, static_argnames=("tile_m", "tile_f"))
def ffn_forward(x, gamma, beta, w1, b1, w2, b2, *, tile_m=256, tile_f=512):
    """x: [B, T, D] -> [B, T, D].  Non-partitioned PositionwiseFeedForward (eval)."""
    B, T, D = x.shape
    F = w1.shape[1]
    M = B * T

    # Large row tiles to keep the MXU busy; clamp for small inputs (must be /8).
    tm = min(tile_m, _round_up(M, 8))
    tf = min(tile_f, _round_up(F, 128))
    m_pad = _round_up(M, tm)
    f_pad = _round_up(F, tf)

    x2d = x.reshape(M, D)
    if m_pad != M:                     # ragged row tail -> zero-pad (LN of a zero
        x2d = jnp.pad(x2d, ((0, m_pad - M), (0, 0)))    # row stays finite)
    if f_pad != F:                     # pad d_ff: relu(0 + 0) = 0 contributes 0
        w1 = jnp.pad(w1, ((0, 0), (0, f_pad - F)))
        b1 = jnp.pad(b1, ((0, f_pad - F),))
        w2 = jnp.pad(w2, ((0, f_pad - F), (0, 0)))

    # Tiny per-feature params kept in f32 (removes repeated in-kernel casts).
    gamma2d = gamma.reshape(1, D).astype(jnp.float32)
    beta2d = beta.reshape(1, D).astype(jnp.float32)
    b1_2d = b1.reshape(1, f_pad).astype(jnp.float32)
    b2_2d = b2.reshape(1, D).astype(jnp.float32)

    grid = (m_pad // tm, f_pad // tf)
    # NOTE: the weight/bias index_maps are constant along the row axis, so the
    # pipeline skips redundant re-copies; pipeline_mode=pl.Buffered(1) could be
    # added on those specs to also drop their second VMEM buffer if VMEM-bound.
    out = pl.pallas_call(
        _ffn_kernel,
        out_shape=jax.ShapeDtypeStruct((m_pad, D), x.dtype),
        grid=grid,
        in_specs=[
            pl.BlockSpec((tm, D), lambda i, f: (i, 0)),    # x row tile
            pl.BlockSpec((1, D), lambda i, f: (0, 0)),     # gamma
            pl.BlockSpec((1, D), lambda i, f: (0, 0)),     # beta
            pl.BlockSpec((D, tf), lambda i, f: (0, f)),    # W1[:, f-slice]
            pl.BlockSpec((1, tf), lambda i, f: (0, f)),    # b1[f-slice]
            pl.BlockSpec((tf, D), lambda i, f: (f, 0)),    # W2[f-slice, :]
            pl.BlockSpec((1, D), lambda i, f: (0, 0)),     # b2
        ],
        out_specs=pl.BlockSpec((tm, D), lambda i, f: (i, 0)),
        scratch_shapes=[
            pltpu.VMEM((tm, D), jnp.float32),   # cached LayerNorm(x)
            pltpu.VMEM((tm, D), jnp.float32),   # f32 output accumulator
        ],
        compiler_params=pltpu.CompilerParams(
            dimension_semantics=("parallel", "arbitrary"),
            vmem_limit_bytes=64 * 1024 * 1024,
        ),
    )(x2d, gamma2d, beta2d, w1, b1_2d, w2, b2_2d)

    if m_pad != M:
        out = out[:M]
    return out.reshape(B, T, D)


def ffn_forward_partitioned(x, d_content, params_c, params_p, *, tile_m=256, tile_f=512):
    """Partitioned branch: content / position halves through the same fused kernel,
    then concat.  (For best store throughput each half's d_model should be >=128;
    sub-128 halves compile but fall back to masked partial stores.)"""
    xc = x[:, :, :d_content]
    xp = x[:, :, d_content:]
    outc = ffn_forward(xc, *params_c, tile_m=tile_m, tile_f=tile_f)
    outp = ffn_forward(xp, *params_p, tile_m=tile_m, tile_f=tile_f)
    # torch adds the residual after concat; per-slab residual + concat(xc, xp) == x
    # gives the identical result.
    return jnp.concatenate([outc, outp], axis=-1)


def _reference(x, gamma, beta, w1, b1, w2, b2):
    xf = x.astype(jnp.float32)
    mean = jnp.mean(xf, axis=-1, keepdims=True)
    var = jnp.mean(jnp.square(xf - mean), axis=-1, keepdims=True)
    xn = ((xf - mean) * jax.lax.rsqrt(var + 1e-6) * gamma.astype(jnp.float32)
          + beta.astype(jnp.float32))
    h = jnp.maximum(xn @ w1.astype(jnp.float32) + b1.astype(jnp.float32), 0.0)
    return (h @ w2.astype(jnp.float32) + b2.astype(jnp.float32) + xf).astype(x.dtype)


def _make_params(key, d_model, d_ff):
    ks = jax.random.split(key, 4)
    gamma = jnp.ones((d_model,), jnp.float32)
    beta = jnp.zeros((d_model,), jnp.float32)
    w1 = jax.random.normal(ks[0], (d_model, d_ff), jnp.float32) * 0.05
    b1 = jax.random.normal(ks[1], (d_ff,), jnp.float32) * 0.01
    w2 = jax.random.normal(ks[2], (d_ff, d_model), jnp.float32) * 0.05
    b2 = jax.random.normal(ks[3], (d_model,), jnp.float32) * 0.01
    return gamma, beta, w1, b1, w2, b2


if __name__ == "__main__":
    key = jax.random.PRNGKey(0)
    # Small but lane-dense shapes; T=7 exercises the ragged-row padding path.
    B, T, d_model, d_ff = 2, 7, 128, 256

    k_x, k_p, k_pc, k_pp = jax.random.split(key, 4)
    x = jax.random.normal(k_x, (B, T, d_model), jnp.float32)

    # --- non-partitioned (d_content=None) branch, f32 weights ---
    params = _make_params(k_p, d_model, d_ff)
    out = jax.block_until_ready(ffn_forward(x, *params))
    ref = _reference(x, *params)
    assert out.shape == (B, T, d_model)
    assert jnp.allclose(out, ref, atol=1e-4, rtol=1e-4), "non-partitioned mismatch"

    # --- same branch with native bf16 weights (MXU-friendly path) ---
    gamma, beta, w1, b1, w2, b2 = params
    out_bf16 = jax.block_until_ready(
        ffn_forward(x, gamma, beta,
                    w1.astype(jnp.bfloat16), b1.astype(jnp.bfloat16),
                    w2.astype(jnp.bfloat16), b2.astype(jnp.bfloat16)))
    assert jnp.allclose(out_bf16, ref, atol=5e-2, rtol=5e-2), "bf16 mismatch"

    # --- partitioned branch (d_content = d_model // 2) ---
    d_content = d_model // 2
    params_c = _make_params(k_pc, d_content, d_ff // 2)
    params_p = _make_params(k_pp, d_model - d_content, d_ff // 2)
    out_part = jax.block_until_ready(
        ffn_forward_partitioned(x, d_content, params_c, params_p))
    ref_part = jnp.concatenate(
        [_reference(x[:, :, :d_content], *params_c),
         _reference(x[:, :, d_content:], *params_p)], axis=-1)
    assert jnp.allclose(out_part, ref_part, atol=1e-4, rtol=1e-4), "partitioned mismatch"

    print("KERNEL_OK")
</pallas_src>

<mosaic_0001>
module attributes {stable_mosaic.version = 11 : i64} {
  func.func @_ffn_kernel(%arg0: i32, %arg1: i32, %arg2: memref<16x128xf32, #tpu.memory_space<vmem>>, %arg3: memref<1x128xf32, #tpu.memory_space<vmem>>, %arg4: memref<1x128xf32, #tpu.memory_space<vmem>>, %arg5: memref<128x256xf32, #tpu.memory_space<vmem>>, %arg6: memref<1x256xf32, #tpu.memory_space<vmem>>, %arg7: memref<256x128xf32, #tpu.memory_space<vmem>>, %arg8: memref<1x128xf32, #tpu.memory_space<vmem>>, %arg9: memref<16x128xf32, #tpu.memory_space<vmem>>, %arg10: memref<16x128xf32, #tpu.memory_space<vmem>>, %arg11: memref<16x128xf32, #tpu.memory_space<vmem>>) attributes {dimension_semantics = [#tpu.dimension_semantics<parallel>, #tpu.dimension_semantics<arbitrary>], iteration_bounds = array<i64: 1, 1>, scalar_prefetch = 0 : i64, scratch_operands = 2 : i64, tpu.core_type = #tpu.core_type<tc>, window_params = [{transform_indices = @transform_0, window_bounds = array<i64: 16, 128>}, {pipeline_mode = #tpu.pipeline_mode<synchronous>, transform_indices = @transform_1, window_bounds = array<i64: 1, 128>}, {pipeline_mode = #tpu.pipeline_mode<synchronous>, transform_indices = @transform_2, window_bounds = array<i64: 1, 128>}, {transform_indices = @transform_3, window_bounds = array<i64: 128, 256>}, {transform_indices = @transform_4, window_bounds = array<i64: 1, 256>}, {transform_indices = @transform_5, window_bounds = array<i64: 256, 128>}, {pipeline_mode = #tpu.pipeline_mode<synchronous>, transform_indices = @transform_6, window_bounds = array<i64: 1, 128>}, {transform_indices = @transform_7, window_bounds = array<i64: 16, 128>}]} {
    %c0_i32 = arith.constant 0 : i32
    %0 = arith.cmpi eq, %arg1, %c0_i32 : i32
    %1 = arith.extui %0 : i1 to i32
    %c0_i32_0 = arith.constant 0 : i32
    %2 = arith.cmpi ne, %1, %c0_i32_0 : i32
    scf.if %2 {
      %c0_16 = arith.constant 0 : index
      %c0_17 = arith.constant 0 : index
      %19 = vector.load %arg2[%c0_16, %c0_17] : memref<16x128xf32, #tpu.memory_space<vmem>>, vector<16x128xf32>
      %cst_18 = arith.constant dense<0.000000e+00> : vector<16xf32>
      %20 = vector.multi_reduction <add>, %19, %cst_18 [1] : vector<16x128xf32> to vector<16xf32>
      %21 = vector.shape_cast %20 : vector<16xf32> to vector<16x1xf32>
      %cst_19 = arith.constant 1.280000e+02 : f32
      %22 = vector.broadcast %cst_19 : f32 to vector<16x1xf32>
      %23 = arith.divf %21, %22 : vector<16x1xf32>
      %24 = vector.broadcast %23 : vector<16x1xf32> to vector<16x128xf32>
      %25 = arith.subf %19, %24 : vector<16x128xf32>
      %26 = arith.mulf %25, %25 : vector<16x128xf32>
      %cst_20 = arith.constant dense<0.000000e+00> : vector<16xf32>
      %27 = vector.multi_reduction <add>, %26, %cst_20 [1] : vector<16x128xf32> to vector<16xf32>
      %28 = vector.shape_cast %27 : vector<16xf32> to vector<16x1xf32>
      %cst_21 = arith.constant 1.280000e+02 : f32
      %29 = vector.broadcast %cst_21 : f32 to vector<16x1xf32>
      %30 = arith.divf %28, %29 : vector<16x1xf32>
      %31 = vector.broadcast %23 : vector<16x1xf32> to vector<16x128xf32>
      %32 = arith.subf %19, %31 : vector<16x128xf32>
      %cst_22 = arith.constant 9.99999997E-7 : f32
      %33 = vector.broadcast %cst_22 : f32 to vector<16x1xf32>
      %34 = arith.addf %30, %33 : vector<16x1xf32>
      %35 = math.rsqrt %34 : vector<16x1xf32>
      %36 = vector.broadcast %35 : vector<16x1xf32> to vector<16x128xf32>
      %37 = arith.mulf %32, %36 : vector<16x128xf32>
      %c0_23 = arith.constant 0 : index
      %c0_24 = arith.constant 0 : index
      %38 = vector.load %arg3[%c0_23, %c0_24] : memref<1x128xf32, #tpu.memory_space<vmem>>, vector<1x128xf32>
      %39 = vector.broadcast %38 : vector<1x128xf32> to vector<16x128xf32>
      %40 = arith.mulf %37, %39 : vector<16x128xf32>
      %c0_25 = arith.constant 0 : index
      %c0_26 = arith.constant 0 : index
      %41 = vector.load %arg4[%c0_25, %c0_26] : memref<1x128xf32, #tpu.memory_space<vmem>>, vector<1x128xf32>
      %42 = vector.broadcast %41 : vector<1x128xf32> to vector<16x128xf32>
      %43 = arith.addf %40, %42 : vector<16x128xf32>
      %c0_27 = arith.constant 0 : index
      %c0_28 = arith.constant 0 : index
      %44 = vector.load %arg10[%c0_27, %c0_28] : memref<16x128xf32, #tpu.memory_space<vmem>>, vector<16x128xf32>
      tpu.vector_store %arg10[%c0_27, %c0_28], %43 {strides = array<i32>} : memref<16x128xf32, #tpu.memory_space<vmem>>, vector<16x128xf32>,
      %cst_29 = arith.constant 0.000000e+00 : f32
      %45 = vector.broadcast %cst_29 : f32 to vector<16x128xf32>
      %c0_30 = arith.constant 0 : index
      %c0_31 = arith.constant 0 : index
      %46 = vector.load %arg11[%c0_30, %c0_31] : memref<16x128xf32, #tpu.memory_space<vmem>>, vector<16x128xf32>
      tpu.vector_store %arg11[%c0_30, %c0_31], %45 {strides = array<i32>} : memref<16x128xf32, #tpu.memory_space<vmem>>, vector<16x128xf32>,
    } else {
    }
    %c0 = arith.constant 0 : index
    %c0_1 = arith.constant 0 : index
    %3 = vector.load %arg10[%c0, %c0_1] : memref<16x128xf32, #tpu.memory_space<vmem>>, vector<16x128xf32>
    %c0_2 = arith.constant 0 : index
    %c0_3 = arith.constant 0 : index
    %4 = vector.load %arg5[%c0_2, %c0_3] : memref<128x256xf32, #tpu.memory_space<vmem>>, vector<128x256xf32>
    %cst = arith.constant dense<0.000000e+00> : vector<16x256xf32>
    %5 = tpu.matmul %3, %4, %cst {dimension_numbers = #tpu.dot_dimension_numbers<[1], [0], [0], [1], [0, 0, 1, 1], [], []>} : vector<16x128xf32>, vector<128x256xf32>, vector<16x256xf32> -> vector<16x256xf32>
    %c0_4 = arith.constant 0 : index
    %c0_5 = arith.constant 0 : index
    %6 = vector.load %arg6[%c0_4, %c0_5] : memref<1x256xf32, #tpu.memory_space<vmem>>, vector<1x256xf32>
    %7 = vector.broadcast %6 : vector<1x256xf32> to vector<16x256xf32>
    %8 = arith.addf %5, %7 : vector<16x256xf32>
    %cst_6 = arith.constant 0.000000e+00 : f32
    %9 = vector.broadcast %cst_6 : f32 to vector<16x256xf32>
    %10 = arith.maximumf %8, %9 : vector<16x256xf32>
    %c0_7 = arith.constant 0 : index
    %c0_8 = arith.constant 0 : index
    %11 = vector.load %arg11[%c0_7, %c0_8] : memref<16x128xf32, #tpu.memory_space<vmem>>, vector<16x128xf32>
    %c0_9 = arith.constant 0 : index
    %c0_10 = arith.constant 0 : index
    %12 = vector.load %arg7[%c0_9, %c0_10] : memref<256x128xf32, #tpu.memory_space<vmem>>, vector<256x128xf32>
    %cst_11 = arith.constant dense<0.000000e+00> : vector<16x128xf32>
    %13 = tpu.matmul %10, %12, %cst_11 {dimension_numbers = #tpu.dot_dimension_numbers<[1], [0], [0], [1], [0, 0, 1, 1], [], []>} : vector<16x256xf32>, vector<256x128xf32>, vector<16x128xf32> -> vector<16x128xf32>
    %14 = arith.addf %11, %13 : vector<16x128xf32>
    %c0_12 = arith.constant 0 : index
    %c0_13 = arith.constant 0 : index
    %15 = vector.load %arg11[%c0_12, %c0_13] : memref<16x128xf32, #tpu.memory_space<vmem>>, vector<16x128xf32>
    tpu.vector_store %arg11[%c0_12, %c0_13], %14 {strides = array<i32>} : memref<16x128xf32, #tpu.memory_space<vmem>>, vector<16x128xf32>,
    %c0_i32_14 = arith.constant 0 : i32
    %16 = arith.cmpi eq, %arg1, %c0_i32_14 : i32
    %17 = arith.extui %16 : i1 to i32
    %c0_i32_15 = arith.constant 0 : i32
    %18 = arith.cmpi ne, %17, %c0_i32_15 : i32
    scf.if %18 {
      %c0_16 = arith.constant 0 : index
      %c0_17 = arith.constant 0 : index
      %19 = vector.load %arg11[%c0_16, %c0_17] : memref<16x128xf32, #tpu.memory_space<vmem>>, vector<16x128xf32>
      %c0_18 = arith.constant 0 : index
      %c0_19 = arith.constant 0 : index
      %20 = vector.load %arg8[%c0_18, %c0_19] : memref<1x128xf32, #tpu.memory_space<vmem>>, vector<1x128xf32>
      %21 = vector.broadcast %20 : vector<1x128xf32> to vector<16x128xf32>
      %22 = arith.addf %19, %21 : vector<16x128xf32>
      %c0_20 = arith.constant 0 : index
      %c0_21 = arith.constant 0 : index
      %23 = vector.load %arg2[%c0_20, %c0_21] : memref<16x128xf32, #tpu.memory_space<vmem>>, vector<16x128xf32>
      %24 = arith.addf %22, %23 : vector<16x128xf32>
      %c0_22 = arith.constant 0 : index
      %c0_23 = arith.constant 0 : index
      %25 = vector.load %arg9[%c0_22, %c0_23] : memref<16x128xf32, #tpu.memory_space<vmem>>, vector<16x128xf32>
      tpu.vector_store %arg9[%c0_22, %c0_23], %24 {strides = array<i32>} : memref<16x128xf32, #tpu.memory_space<vmem>>, vector<16x128xf32>,
    } else {
    }
    return
  }
  func.func @transform_0(%arg0: i32, %arg1: i32) -> (i32, i32) {
    %c0_i32 = arith.constant 0 : i32
    %c0_i32_0 = arith.constant 0 : i32
    return %arg0, %c0_i32 : i32, i32
  }
  func.func @transform_1(%arg0: i32, %arg1: i32) -> (i32, i32) {
    %c0_i32 = arith.constant 0 : i32
    %c0_i32_0 = arith.constant 0 : i32
    %c0_i32_1 = arith.constant 0 : i32
    return %c0_i32, %c0_i32_0 : i32, i32
  }
  func.func @transform_2(%arg0: i32, %arg1: i32) -> (i32, i32) {
    %c0_i32 = arith.constant 0 : i32
    %c0_i32_0 = arith.constant 0 : i32
    %c0_i32_1 = arith.constant 0 : i32
    return %c0_i32, %c0_i32_0 : i32, i32
  }
  func.func @transform_3(%arg0: i32, %arg1: i32) -> (i32, i32) {
    %c0_i32 = arith.constant 0 : i32
    %c0_i32_0 = arith.constant 0 : i32
    return %c0_i32, %arg1 : i32, i32
  }
  func.func @transform_4(%arg0: i32, %arg1: i32) -> (i32, i32) {
    %c0_i32 = arith.constant 0 : i32
    %c0_i32_0 = arith.constant 0 : i32
    return %c0_i32, %arg1 : i32, i32
  }
  func.func @transform_5(%arg0: i32, %arg1: i32) -> (i32, i32) {
    %c0_i32 = arith.constant 0 : i32
    %c0_i32_0 = arith.constant 0 : i32
    return %arg1, %c0_i32 : i32, i32
  }
  func.func @transform_6(%arg0: i32, %arg1: i32) -> (i32, i32) {
    %c0_i32 = arith.constant 0 : i32
    %c0_i32_0 = arith.constant 0 : i32
    %c0_i32_1 = arith.constant 0 : i32
    return %c0_i32, %c0_i32_0 : i32, i32
  }
  func.func @transform_7(%arg0: i32, %arg1: i32) -> (i32, i32) {
    %c0_i32 = arith.constant 0 : i32
    %c0_i32_0 = arith.constant 0 : i32
    return %arg0, %c0_i32 : i32, i32
  }
}

</mosaic_0001>

<llo_original>
// kernel: ffn_forward.1
$region0: #{ffn_forward.1}
  #allocation0 [shape = 'u32[]', space=smem, size = 0x4, offset = 0x4, fixed_abs, tag = 'smem constant byte address 0x4 - core index']
  #allocation1 [shape = 'u32[144,128]{1,0:T(1,128)}', space=vmem, size = 0x12000, scoped, tag = 'internal scratch']
  #allocation2 [shape = 'f32[16,128]{1,0:T(8,128)}', space=vmem, size = 0x2000, scoped, tag = 'scratch operand']
  #allocation3 [shape = 'f32[16,128]{1,0:T(8,128)}', space=vmem, size = 0x2000, scoped, tag = 'scratch operand']
  %s0 = inlined_call_operand.vmem [shape: f32[16,128], index: 0, kind: input, shape index: {}]
  %s1 = inlined_call_operand.vmem [shape: f32[1,128], index: 1, kind: input, shape index: {}]
  %s2 = inlined_call_operand.vmem [shape: f32[1,128], index: 2, kind: input, shape index: {}]
  %s3 = inlined_call_operand.hbm [shape: f32[128,256], index: 3, kind: input, shape index: {}]
  %s4 = inlined_call_operand.vmem [shape: f32[1,256], index: 4, kind: input, shape index: {}]
  %s5 = inlined_call_operand.hbm [shape: f32[256,128], index: 5, kind: input, shape index: {}]
  %s6 = inlined_call_operand.vmem [shape: f32[1,128], index: 6, kind: input, shape index: {}]
  %s7 = inlined_call_operand.vmem [shape: f32[16,128], index: 7, kind: output, shape index: {}]
  %s8 = sld [smem:[#allocation0]]
  $region54: #{ffn_forward.1} parent=0
    _
  %s10 = ssub.s32 1, %s8
  %s11 = scalar_select 0, %s10, %s8
  $region1: #{ffn_forward.1} parent=0
    #allocation4 [shape = 'u8[131072]{0}', space=vmem, size = 0x20000, scoped, tag = 'input window, operand 3, single buffered']
    #allocation5 [shape = 's32[1]{0}', space=sflag, size = 0x4, scoped, tag = 'scoped memory for ffn_forward.1']
    #allocation6 [shape = 'u8[131072]{0}', space=vmem, size = 0x20000, scoped, tag = 'input window, operand 5, single buffered']
    #allocation7 [shape = 's32[1]{0}', space=sflag, size = 0x4, scoped, tag = 'scoped memory for ffn_forward.1']
    %12 = vsyncpa [#allocation5], 0
    %13 = vsyncpa [#allocation7], 0
    // Predicated region
    $region2: #{ffn_forward.1} parent=1 // pred_check
      _
    $region3: #{ffn_forward.1} parent=1 // pred_check_branch
      %15 = sbr.rel (0) target = $region5
    $region4: #{ffn_forward.1} parent=1 // pred_region
      _
    $region5: #{ffn_forward.1} parent=1 // pred_fallthru
      _
    // Predicated region
    $region6: #{ffn_forward.1} parent=1 // pred_check
      _
    $region7: #{ffn_forward.1} parent=1 // pred_check_branch
      %17 = sbr.rel (0) target = $region9
    $region8: #{ffn_forward.1} parent=1 // pred_region
      _
    $region9: #{ffn_forward.1} parent=1 // pred_fallthru
      _
    // Predicated region
    $region10: #{ffn_forward.1} parent=1 // pred_check
      _
    $region11: #{ffn_forward.1} parent=1 // pred_check_branch
      %19 = sbr.rel (0) target = $region13
    $region12: #{ffn_forward.1} parent=1 // pred_region
      _
    $region13: #{ffn_forward.1} parent=1 // pred_fallthru
      _
    // Predicated region
    $region14: #{ffn_forward.1} parent=1 // pred_check
      _
    $region15: #{ffn_forward.1} parent=1 // pred_check_branch
      %21 = sbr.rel (0) target = $region17
    $region16: #{ffn_forward.1} parent=1 // pred_region
      %s23 = ssub.s32 4096, 4096
      %24 = vsyncadd [#allocation5], %s23
      %s25 = sshll.u32 [#allocation4], 4
      %s26 = int_to_ptr.vmem [resolvable:$true] %s25
      %31 = dma.hbm_to_vmem [thread:$0]  %s3, 4096, %s26, [#allocation5], 256, 256, 16
    $region17: #{ffn_forward.1} parent=1 // pred_fallthru
      _
    // Predicated region
    $region18: #{ffn_forward.1} parent=1 // pred_check
      _
    $region19: #{ffn_forward.1} parent=1 // pred_check_branch
      %33 = sbr.rel (0) target = $region21
    $region20: #{ffn_forward.1} parent=1 // pred_region
      _
    $region21: #{ffn_forward.1} parent=1 // pred_fallthru
      _
    // Predicated region
    $region22: #{ffn_forward.1} parent=1 // pred_check
      _
    $region23: #{ffn_forward.1} parent=1 // pred_check_branch
      %35 = sbr.rel (0) target = $region25
    $region24: #{ffn_forward.1} parent=1 // pred_region
      %s37 = ssub.s32 4096, 4096
      %38 = vsyncadd [#allocation7], %s37
      %s39 = sshll.u32 [#allocation6], 4
      %s40 = int_to_ptr.vmem [resolvable:$true] %s39
      %45 = dma.hbm_to_vmem [thread:$0]  %s5, 4096, %s40, [#allocation7], 128, 128, 8
    $region25: #{ffn_forward.1} parent=1 // pred_fallthru
      _
    // Predicated region
    $region26: #{ffn_forward.1} parent=1 // pred_check
      _
    $region27: #{ffn_forward.1} parent=1 // pred_check_branch
      %47 = sbr.rel (0) target = $region29
    $region28: #{ffn_forward.1} parent=1 // pred_region
      _
    $region29: #{ffn_forward.1} parent=1 // pred_fallthru
      _
    // Predicated region
    $region30: #{ffn_forward.1} parent=1 // pred_check
      _
    $region31: #{ffn_forward.1} parent=1 // pred_check_branch
      %49 = sbr.rel (0) target = $region33
    $region32: #{ffn_forward.1} parent=1 // pred_region
      %50 = dma.done [#allocation5], 4096
    $region33: #{ffn_forward.1} parent=1 // pred_fallthru
      _
    // Predicated region
    $region34: #{ffn_forward.1} parent=1 // pred_check
      _
    $region35: #{ffn_forward.1} parent=1 // pred_check_branch
      %52 = sbr.rel (0) target = $region37
    $region36: #{ffn_forward.1} parent=1 // pred_region
      %53 = dma.done [#allocation7], 4096
    $region37: #{ffn_forward.1} parent=1 // pred_fallthru
      _
    %p54 = scmp.eq.s32.totalorder 0, 0
    // Predicated region
    $region38: #{ffn_forward.1} parent=1 // pred_check
      %p55 = pneg %p54
    $region39: #{ffn_forward.1} parent=1 // pred_check_branch
      %57 = sbr.rel (%p55) target = $region41
    $region40: #{ffn_forward.1} parent=1 // pred_region
      %v58 = vld [vmem:[%s0] sm:$0xff]
      %v59 = vld [vmem:[%s0 + $0x8] sm:$0xff]
      %60 = vadd.xlane.f32.xlu0 %v58
      %v61 = vpop.xlane.xlu0 %60
      %62 = vadd.xlane.f32.xlu0 %v59
      %v63 = vpop.xlane.xlu0 %62
      %v64 = vrcp.pop 128.0
      %v65 = vmul.f32 %v61, %v64
      %v66 = vmul.f32 %v63, %v64
      %v67 = vsub.f32 %v58, %v65
      %v68 = vsub.f32 %v59, %v66
      %v69 = vmul.f32 %v67, %v67
      %v70 = vmul.f32 %v68, %v68
      %71 = vadd.xlane.f32.xlu0 %v69
      %v72 = vpop.xlane.xlu0 %71
      %73 = vadd.xlane.f32.xlu0 %v70
      %v74 = vpop.xlane.xlu0 %73
      %v75 = vmul.f32 %v72, %v64
      %v76 = vmul.f32 %v74, %v64
      %v77 = vadd.f32 %v75, 1e-06
      %v78 = vadd.f32 %v76, 1e-06
      %v79 = vrsqrt.pop %v77
      %v80 = vrsqrt.pop %v78
      %v81 = vmul.f32 %v67, %v79
      %v82 = vmul.f32 %v68, %v80
      %v83 = vld [vmem:[%s1] sm:$0x1]
      %v85 = vlaneseq
      %v86 = vshrl.u32 %v85, 7
      %v87 = vsub.s32 0, %v86
      %v88 = vrot.slane %v83, %v87
      %v90 = vmul.f32 %v81, %v88
      %v91 = vmul.f32 %v82, %v88
      %v92 = vld [vmem:[%s2] sm:$0x1]
      %v94 = vlaneseq
      %v95 = vshrl.u32 %v94, 7
      %v96 = vsub.s32 0, %v95
      %v97 = vrot.slane %v92, %v96
      %v99 = vadd.f32 %v90, %v97
      %v100 = vadd.f32 %v91, %v97
      %101 = vst [vmem:[#allocation2] sm:$0xff] %v99
      %102 = vst [vmem:[#allocation2 + $0x8] sm:$0xff] %v100
      %103 = vst [vmem:[#allocation3] sm:$0xff] 0.0
      %104 = vst [vmem:[#allocation3 + $0x8] sm:$0xff] 0.0
    $region41: #{ffn_forward.1} parent=1 // pred_fallthru
      _
    %v105 = vld [vmem:[#allocation2] sm:$0xff]
    %v106 = vld [vmem:[#allocation2 + $0x8] sm:$0xff]
    %v107 = vld [vmem:[#allocation4] sm:$0xff]
    %v108 = vld [vmem:[#allocation4 + $0x8] sm:$0xff]
    %v109 = vld [vmem:[#allocation4 + $0x10] sm:$0xff]
    %v110 = vld [vmem:[#allocation4 + $0x18] sm:$0xff]
    %v111 = vld [vmem:[#allocation4 + $0x20] sm:$0xff]
    %v112 = vld [vmem:[#allocation4 + $0x28] sm:$0xff]
    %v113 = vld [vmem:[#allocation4 + $0x30] sm:$0xff]
    %v114 = vld [vmem:[#allocation4 + $0x38] sm:$0xff]
    %v115 = vld [vmem:[#allocation4 + $0x40] sm:$0xff]
    %v116 = vld [vmem:[#allocation4 + $0x48] sm:$0xff]
    %v117 = vld [vmem:[#allocation4 + $0x50] sm:$0xff]
    %v118 = vld [vmem:[#allocation4 + $0x58] sm:$0xff]
    %v119 = vld [vmem:[#allocation4 + $0x60] sm:$0xff]
    %v120 = vld [vmem:[#allocation4 + $0x68] sm:$0xff]
    %v121 = vld [vmem:[#allocation4 + $0x70] sm:$0xff]
    %v122 = vld [vmem:[#allocation4 + $0x78] sm:$0xff]
    %v123 = vld [vmem:[#allocation4 + $0x80] sm:$0xff]
    %v124 = vld [vmem:[#allocation4 + $0x88] sm:$0xff]
    %v125 = vld [vmem:[#allocation4 + $0x90] sm:$0xff]
    %v126 = vld [vmem:[#allocation4 + $0x98] sm:$0xff]
    %v127 = vld [vmem:[#allocation4 + $0xa0] sm:$0xff]
    %v128 = vld [vmem:[#allocation4 + $0xa8] sm:$0xff]
    %v129 = vld [vmem:[#allocation4 + $0xb0] sm:$0xff]
    %v130 = vld [vmem:[#allocation4 + $0xb8] sm:$0xff]
    %v131 = vld [vmem:[#allocation4 + $0xc0] sm:$0xff]
    %v132 = vld [vmem:[#allocation4 + $0xc8] sm:$0xff]
    %v133 = vld [vmem:[#allocation4 + $0xd0] sm:$0xff]
    %v134 = vld [vmem:[#allocation4 + $0xd8] sm:$0xff]
    %v135 = vld [vmem:[#allocation4 + $0xe0] sm:$0xff]
    %v136 = vld [vmem:[#allocation4 + $0xe8] sm:$0xff]
    %v137 = vld [vmem:[#allocation4 + $0xf0] sm:$0xff]
    %v138 = vld [vmem:[#allocation4 + $0xf8] sm:$0xff]
    %v139 = vld [vmem:[%s4] sm:$0x3]
    %v141 = vlaneseq
    %v142 = vshrl.u32 %v141, 7
    %v143 = vsub.s32 0, %v142
    %v144 = vrot.slane %v139, %v143
    %v145 = vlaneseq
    %v146 = vshrl.u32 %v145, 7
    %v147 = vsub.s32 1, %v146
    %v148 = vrot.slane %v139, %v147
    %151 = vmatprep.subr.mxu0 %v138
    %152 = vmatpush1.msra.mxu0 %v137
    %153 = vmatprep.subr.mxu0 %v136
    %154 = vmatpush1.msra.mxu0 %v135
    %155 = vmatprep.subr.mxu0 %v134
    %156 = vmatpush1.msra.mxu0 %v133
    %157 = vmatprep.subr.mxu0 %v132
    %158 = vmatpush1.msra.mxu0 %v131
    %159 = vmatprep.subr.mxu0 %v130
    %160 = vmatpush1.msra.mxu0 %v129
    %161 = vmatprep.subr.mxu0 %v128
    %162 = vmatpush1.msra.mxu0 %v127
    %163 = vmatprep.subr.mxu0 %v126
    %164 = vmatpush1.msra.mxu0 %v125
    %165 = vmatprep.subr.mxu0 %v124
    %166 = vmatpush1.msra.mxu0 %v123
    %167 = vmatprep.subr.mxu0 %v122
    %168 = vmatpush1.msra.mxu0 %v121
    %169 = vmatprep.subr.mxu0 %v120
    %170 = vmatpush1.msra.mxu0 %v119
    %171 = vmatprep.subr.mxu0 %v118
    %172 = vmatpush1.msra.mxu0 %v117
    %173 = vmatprep.subr.mxu0 %v116
    %174 = vmatpush1.msra.mxu0 %v115
    %175 = vmatprep.subr.mxu0 %v114
    %176 = vmatpush1.msra.mxu0 %v113
    %177 = vmatprep.subr.mxu0 %v112
    %178 = vmatpush1.msra.mxu0 %v111
    %179 = vmatprep.subr.mxu0 %v110
    %180 = vmatpush1.msra.mxu0 %v109
    %181 = vmatprep.subr.mxu0 %v108
    %182 = vmatpush1.msra.mxu0 %v107
    %183 = vmatprep.subr.mxu0 0.0
    %184 = vmatpush2.msra.mxu0 0.0
    %185 = vmatprep.subr.mxu0 0.0
    %186 = vmatpush2.msra.mxu0 0.0
    %187 = vmatprep.subr.mxu0 0.0
    %188 = vmatpush2.msra.mxu0 0.0
    %189 = vmatprep.subr.mxu0 0.0
    %190 = vmatpush2.msra.mxu0 0.0
    %191 = vmatprep.subr.mxu0 0.0
    %192 = vmatpush2.msra.mxu0 0.0
    %193 = vmatprep.subr.mxu0 0.0
    %194 = vmatpush2.msra.mxu0 0.0
    %195 = vmatprep.subr.mxu0 0.0
    %196 = vmatpush2.msra.mxu0 0.0
    %197 = vmatprep.subr.mxu0 0.0
    %198 = vmatpush2.msra.mxu0 0.0
    %199 = vmatprep.subr.mxu0 0.0
    %200 = vmatpush2.msra.mxu0 0.0
    %201 = vmatprep.subr.mxu0 0.0
    %202 = vmatpush2.msra.mxu0 0.0
    %203 = vmatprep.subr.mxu0 0.0
    %204 = vmatpush2.msra.mxu0 0.0
    %205 = vmatprep.subr.mxu0 0.0
    %206 = vmatpush2.msra.mxu0 0.0
    %207 = vmatprep.subr.mxu0 0.0
    %208 = vmatpush2.msra.mxu0 0.0
    %209 = vmatprep.subr.mxu0 0.0
    %210 = vmatpush2.msra.mxu0 0.0
    %211 = vmatprep.subr.mxu0 0.0
    %212 = vmatpush2.msra.mxu0 0.0
    %213 = vmatprep.subr.mxu0 0.0
    %214 = vmatpush2.msra.mxu0 0.0
    %215 = vmatprep.mubr.f32.mxu0 0.0
    %216 = vmatmul.mubr.f32.gmra.mxu0 %v105
    %v217 = vpop.f32.mrf.mxu0
    %v218 = vadd.f32 %v144, %v217
    %v219 = vpop.f32.mrf.mxu0
    %v220 = vadd.f32 %v148, %v219
    %221 = vmatprep.mubr.f32.mxu0 0.0
    %222 = vmatmul.mubr.f32.gmra.mxu0 %v106
    %v223 = vpop.f32.mrf.mxu0
    %v224 = vadd.f32 %v144, %v223
    %v225 = vpop.f32.mrf.mxu0
    %v226 = vadd.f32 %v148, %v225
    %227 = vdwg.mxu0
    %v228 = vmax.f32 %v218, 0.0
    %v229 = vmax.f32 %v220, 0.0
    %v230 = vmax.f32 %v224, 0.0
    %v231 = vmax.f32 %v226, 0.0
    %v232 = vld [vmem:[#allocation3] sm:$0xff]
    %v233 = vld [vmem:[#allocation3 + $0x8] sm:$0xff]
    %v234 = vld [vmem:[#allocation6] sm:$0xff]
    %v235 = vld [vmem:[#allocation6 + $0x8] sm:$0xff]
    %v236 = vld [vmem:[#allocation6 + $0x10] sm:$0xff]
    %v237 = vld [vmem:[#allocation6 + $0x18] sm:$0xff]
    %v238 = vld [vmem:[#allocation6 + $0x20] sm:$0xff]
    %v239 = vld [vmem:[#allocation6 + $0x28] sm:$0xff]
    %v240 = vld [vmem:[#allocation6 + $0x30] sm:$0xff]
    %v241 = vld [vmem:[#allocation6 + $0x38] sm:$0xff]
    %v242 = vld [vmem:[#allocation6 + $0x40] sm:$0xff]
    %v243 = vld [vmem:[#allocation6 + $0x48] sm:$0xff]
    %v244 = vld [vmem:[#allocation6 + $0x50] sm:$0xff]
    %v245 = vld [vmem:[#allocation6 + $0x58] sm:$0xff]
    %v246 = vld [vmem:[#allocation6 + $0x60] sm:$0xff]
    %v247 = vld [vmem:[#allocation6 + $0x68] sm:$0xff]
    %v248 = vld [vmem:[#allocation6 + $0x70] sm:$0xff]
    %v249 = vld [vmem:[#allocation6 + $0x78] sm:$0xff]
    %v250 = vld [vmem:[#allocation6 + $0x80] sm:$0xff]
    %v251 = vld [vmem:[#allocation6 + $0x88] sm:$0xff]
    %v252 = vld [vmem:[#allocation6 + $0x90] sm:$0xff]
    %v253 = vld [vmem:[#allocation6 + $0x98] sm:$0xff]
    %v254 = vld [vmem:[#allocation6 + $0xa0] sm:$0xff]
    %v255 = vld [vmem:[#allocation6 + $0xa8] sm:$0xff]
    %v256 = vld [vmem:[#allocation6 + $0xb0] sm:$0xff]
    %v257 = vld [vmem:[#allocation6 + $0xb8] sm:$0xff]
    %v258 = vld [vmem:[#allocation6 + $0xc0] sm:$0xff]
    %v259 = vld [vmem:[#allocation6 + $0xc8] sm:$0xff]
    %v260 = vld [vmem:[#allocation6 + $0xd0] sm:$0xff]
    %v261 = vld [vmem:[#allocation6 + $0xd8] sm:$0xff]
    %v262 = vld [vmem:[#allocation6 + $0xe0] sm:$0xff]
    %v263 = vld [vmem:[#allocation6 + $0xe8] sm:$0xff]
    %v264 = vld [vmem:[#allocation6 + $0xf0] sm:$0xff]
    %v265 = vld [vmem:[#allocation6 + $0xf8] sm:$0xff]
    %266 = vmatprep.subr.mxu0 0.0
    %267 = vmatpush1.msra.mxu0 %v249
    %268 = vmatprep.subr.mxu0 0.0
    %269 = vmatpush1.msra.mxu0 %v248
    %270 = vmatprep.subr.mxu0 0.0
    %271 = vmatpush1.msra.mxu0 %v247
    %272 = vmatprep.subr.mxu0 0.0
    %273 = vmatpush1.msra.mxu0 %v246
    %274 = vmatprep.subr.mxu0 0.0
    %275 = vmatpush1.msra.mxu0 %v245
    %276 = vmatprep.subr.mxu0 0.0
    %277 = vmatpush1.msra.mxu0 %v244
    %278 = vmatprep.subr.mxu0 0.0
    %279 = vmatpush1.msra.mxu0 %v243
    %280 = vmatprep.subr.mxu0 0.0
    %281 = vmatpush1.msra.mxu0 %v242
    %282 = vmatprep.subr.mxu0 0.0
    %283 = vmatpush1.msra.mxu0 %v241
    %284 = vmatprep.subr.mxu0 0.0
    %285 = vmatpush1.msra.mxu0 %v240
    %286 = vmatprep.subr.mxu0 0.0
    %287 = vmatpush1.msra.mxu0 %v239
    %288 = vmatprep.subr.mxu0 0.0
    %289 = vmatpush1.msra.mxu0 %v238
    %290 = vmatprep.subr.mxu0 0.0
    %291 = vmatpush1.msra.mxu0 %v237
    %292 = vmatprep.subr.mxu0 0.0
    %293 = vmatpush1.msra.mxu0 %v236
    %294 = vmatprep.subr.mxu0 0.0
    %295 = vmatpush1.msra.mxu0 %v235
    %296 = vmatprep.subr.mxu0 0.0
    %297 = vmatpush1.msra.mxu0 %v234
    %298 = vmatprep.subr.mxu0 0.0
    %299 = vmatpush2.msra.mxu0 %v265
    %300 = vmatprep.subr.mxu0 0.0
    %301 = vmatpush2.msra.mxu0 %v264
    %302 = vmatprep.subr.mxu0 0.0
    %303 = vmatpush2.msra.mxu0 %v263
    %304 = vmatprep.subr.mxu0 0.0
    %305 = vmatpush2.msra.mxu0 %v262
    %306 = vmatprep.subr.mxu0 0.0
    %307 = vmatpush2.msra.mxu0 %v261
    %308 = vmatprep.subr.mxu0 0.0
    %309 = vmatpush2.msra.mxu0 %v260
    %310 = vmatprep.subr.mxu0 0.0
    %311 = vmatpush2.msra.mxu0 %v259
    %312 = vmatprep.subr.mxu0 0.0
    %313 = vmatpush2.msra.mxu0 %v258
    %314 = vmatprep.subr.mxu0 0.0
    %315 = vmatpush2.msra.mxu0 %v257
    %316 = vmatprep.subr.mxu0 0.0
    %317 = vmatpush2.msra.mxu0 %v256
    %318 = vmatprep.subr.mxu0 0.0
    %319 = vmatpush2.msra.mxu0 %v255
    %320 = vmatprep.subr.mxu0 0.0
    %321 = vmatpush2.msra.mxu0 %v254
    %322 = vmatprep.subr.mxu0 0.0
    %323 = vmatpush2.msra.mxu0 %v253
    %324 = vmatprep.subr.mxu0 0.0
    %325 = vmatpush2.msra.mxu0 %v252
    %326 = vmatprep.subr.mxu0 0.0
    %327 = vmatpush2.msra.mxu0 %v251
    %328 = vmatprep.subr.mxu0 0.0
    %329 = vmatpush2.msra.mxu0 %v250
    %330 = vmatprep.mubr.f32.mxu0 %v229
    %331 = vmatmul.mubr.f32.gmra.mxu0 %v228
    %v332 = vpop.f32.mrf.mxu0
    %v333 = vadd.f32 0.0, %v332
    %v334 = vpop.f32.mrf.mxu0
    %335 = vmatprep.mubr.f32.mxu0 %v231
    %336 = vmatmul.mubr.f32.gmra.mxu0 %v230
    %v337 = vpop.f32.mrf.mxu0
    %v338 = vadd.f32 0.0, %v337
    %v339 = vpop.f32.mrf.mxu0
    %340 = vdwg.mxu0
    %v341 = vadd.f32 %v232, %v333
    %v342 = vadd.f32 %v233, %v338
    %343 = vst [vmem:[#allocation3] sm:$0xff] %v341
    %344 = vst [vmem:[#allocation3 + $0x8] sm:$0xff] %v342
    // Predicated region
    $region42: #{ffn_forward.1} parent=1 // pred_check
      %p345 = pneg %p54
    $region43: #{ffn_forward.1} parent=1 // pred_check_branch
      %347 = sbr.rel (%p345) target = $region45
    $region44: #{ffn_forward.1} parent=1 // pred_region
      %v348 = vld [vmem:[#allocation3] sm:$0xff]
      %v349 = vld [vmem:[#allocation3 + $0x8] sm:$0xff]
      %v350 = vld [vmem:[%s6] sm:$0x1]
      %v352 = vlaneseq
      %v353 = vshrl.u32 %v352, 7
      %v354 = vsub.s32 0, %v353
      %v355 = vrot.slane %v350, %v354
      %v357 = vadd.f32 %v348, %v355
      %v358 = vadd.f32 %v349, %v355
      %v359 = vld [vmem:[%s0] sm:$0xff]
      %v360 = vld [vmem:[%s0 + $0x8] sm:$0xff]
      %v361 = vadd.f32 %v357, %v359
      %v362 = vadd.f32 %v358, %v360
      %363 = vst [vmem:[%s7] sm:$0xff] %v361
      %364 = vst [vmem:[%s7 + $0x8] sm:$0xff] %v362
    $region45: #{ffn_forward.1} parent=1 // pred_fallthru
      _
    // Predicated region
    $region46: #{ffn_forward.1} parent=1 // pred_check
      _
    $region47: #{ffn_forward.1} parent=1 // pred_check_branch
      %366 = sbr.rel (0) target = $region49
    $region48: #{ffn_forward.1} parent=1 // pred_region
      _
    $region49: #{ffn_forward.1} parent=1 // pred_fallthru
      _
    // Predicated region
    $region50: #{ffn_forward.1} parent=1 // pred_check
      _
    $region51: #{ffn_forward.1} parent=1 // pred_check_branch
      %368 = sbr.rel (0) target = $region53
    $region52: #{ffn_forward.1} parent=1 // pred_region
      _
    $region53: #{ffn_forward.1} parent=1 // pred_fallthru
      _
    %369 = vsyncpa [#allocation5], 1
    %370 = vsyncpa [#allocation7], 1

</llo_original>
